<compile_context>
chip_gen: v6e
topology: v6e:2x2x1
jax: 0.10.0
libtpu: 0.0.40
codegen_flags: <defaults>
</compile_context>

<pallas_src>
import jax
import jax.numpy as jnp
from jax.experimental import pallas as pl
from jax.experimental.pallas import tpu as pltpu


def _default_act_dtype():
    """bf16 elementwise on chips with bf16 VALUs (v6e/v7x), f32 otherwise (v5e)."""
    try:
        kind = jax.devices()[0].device_kind.lower()
    except Exception:
        return jnp.float32
    if ("v6" in kind) or ("v7" in kind) or ("trillium" in kind):
        return jnp.bfloat16
    return jnp.float32


def _round_up(a, m):
    return ((a + m - 1) // m) * m


def _make_sine_mlp_kernel(tile_b, chunk, act_dtype):
    # Static (start, size) lane sub-chunk spans inside one batch tile.
    spans = [(s, min(chunk, tile_b - s)) for s in range(0, tile_b, chunk)]

    def kernel(x_ref, w1_ref, b1_ref, w2_ref, b2_ref, w3_ref, b3_ref, o_ref):
        # Weights are tiny; hoist the loads out of the chunk loop.
        w1 = w1_ref[...]          # (H, 1)  act_dtype
        b1 = b1_ref[...]          # (H, 1)  act_dtype
        w2 = w2_ref[...]          # (H, H)  bf16  (MXU operand)
        b2 = b2_ref[...]          # (H, 1)  act_dtype
        w3 = w3_ref[...]          # (H, 1)  f32   (layer 3 stays on VPU/XLU)
        b3 = b3_ref[...]          # (1, 1)  f32

        for start, size in spans:                       # static -> zero-cost views
            xc = x_ref[:, start:start + size].astype(act_dtype)      # (1, size)

            # Layer 1: K=1 -> pure VPU broadcast multiply (no MXU).
            h1 = jnp.maximum(w1 * xc + b1, 0).astype(jnp.bfloat16)   # (H, size)

            # Layer 2: HxH bf16 MXU matmul (f32 accumulation inside the MXU).
            h2 = jnp.maximum(
                jnp.dot(w2, h1, preferred_element_type=act_dtype) + b2, 0)

            # Layer 3: M=1 -> VPU multiply + sublane (XLU) reduce in f32.
            out = jnp.sum(w3 * h2, axis=0, keepdims=True) + b3       # (1, size) f32
            o_ref[:, start:start + size] = out

    return kernel


def sine_model_forward(x, params, *, tile_b=4096, chunk=None, act_dtype=None):
    """x: (N, 1) float32 -> (N, 1) float32.

    params are in PyTorch nn.Linear layout:
      w1 (H,1), b1 (H,), w2 (H,H), b2 (H,), w3 (1,H), b3 (1,)
    """
    w1, b1, w2, b2, w3, b3 = params
    H = w1.shape[0]
    N = x.shape[0]

    if act_dtype is None:
        act_dtype = _default_act_dtype()
    if chunk is None:
        chunk = 512 if act_dtype == jnp.bfloat16 else 256

    # (N,1) -> (1,N) is a free (bitcast) reshape; no pad, no extra HBM pass.
    x_t = x.reshape(1, N).astype(jnp.float32)

    # Batch tile: lane-dense multiple of 128 and >= 2 blocks once N >= 256
    # (keeps both v7x TensorCores busy); never larger than the array, ragged
    # last block handled by Pallas partial-block semantics.
    if N >= 256:
        tb = min(tile_b, _round_up(-(-N // 2), 128))
    else:
        tb = N                      # whole array as a single full-dim block
    chunk = min(chunk, tb)
    n_blocks = pl.cdiv(N, tb)

    # One-time weight prep (tiny): bf16 for the MXU operand, act_dtype for the
    # VPU-side weights/biases, f32 column for the layer-3 reduce.
    w1c = w1.reshape(H, 1).astype(act_dtype)
    b1c = b1.reshape(H, 1).astype(act_dtype)
    w2b = w2.astype(jnp.bfloat16)                      # (H, H)
    b2c = b2.reshape(H, 1).astype(act_dtype)
    w3c = w3.reshape(H, 1).astype(jnp.float32)         # row -> column, same order
    b3c = b3.reshape(1, 1).astype(jnp.float32)

    const = lambda a: pl.BlockSpec(a.shape, lambda i: (0,) * a.ndim)
    kernel = _make_sine_mlp_kernel(tb, chunk, act_dtype)

    out_t = pl.pallas_call(
        kernel,
        out_shape=jax.ShapeDtypeStruct((1, N), jnp.float32),
        grid=(n_blocks,),
        in_specs=[
            pl.BlockSpec((1, tb), lambda i: (0, i)),   # x, batch tiled on lanes
            const(w1c), const(b1c),
            const(w2b), const(b2c),
            const(w3c), const(b3c),
        ],
        out_specs=pl.BlockSpec((1, tb), lambda i: (0, i)),
        compiler_params=pltpu.CompilerParams(
            dimension_semantics=("parallel",),
        ),
    )(x_t, w1c, b1c, w2b, b2c, w3c, b3c)

    return out_t.reshape(N, 1)


def init_params(key):
    """PyTorch nn.Linear default init, in PyTorch (out_features, in_features) layout."""
    k1, k2, k3, k4, k5, k6 = jax.random.split(key, 6)

    def uniform_linear(kw, kb, fan_in, fan_out):
        bound = 1.0 / (fan_in ** 0.5)
        w = jax.random.uniform(kw, (fan_out, fan_in), jnp.float32, -bound, bound)
        b = jax.random.uniform(kb, (fan_out,), jnp.float32, -bound, bound)
        return w, b

    w1, b1 = uniform_linear(k1, k2, 1, 64)
    w2, b2 = uniform_linear(k3, k4, 64, 64)
    w3, b3 = uniform_linear(k5, k6, 64, 1)
    return (w1, b1, w2, b2, w3, b3)


if __name__ == "__main__":
    key = jax.random.PRNGKey(0)
    kp, kx, kx2 = jax.random.split(key, 3)

    params = init_params(kp)
    w1, b1, w2, b2, w3, b3 = params

    def ref_f32(xv):  # exact PyTorch f32 semantics
        h1 = jnp.maximum(xv @ w1.T + b1, 0.0)
        h2 = jnp.maximum(h1 @ w2.T + b2, 0.0)
        return h2 @ w3.T + b3

    def ref_bf16_weights(xv):  # mirrors the kernel's f32-activation path
        h1 = jnp.maximum(xv @ w1.T + b1, 0.0)
        h2 = jnp.maximum(
            jnp.dot(h1.astype(jnp.bfloat16), w2.astype(jnp.bfloat16).T,
                    preferred_element_type=jnp.float32) + b2, 0.0)
        return h2 @ w3.T + b3

    fwd = jax.jit(sine_model_forward)

    # Small batch: single full-array block path.
    N = 8
    x = jax.random.uniform(kx, (N, 1), jnp.float32, -3.14159, 3.14159)
    out = jax.block_until_ready(fwd(x, params))
    assert out.shape == (N, 1)
    assert bool(jnp.all(jnp.isfinite(out)))
    assert jnp.allclose(out, ref_f32(x), atol=1e-1, rtol=1e-1)

    # Explicit f32-activation path vs. matched reference (tight tolerance).
    out_f32 = jax.block_until_ready(
        sine_model_forward(x, params, act_dtype=jnp.float32))
    assert jnp.allclose(out_f32, ref_bf16_weights(x), atol=2e-3, rtol=2e-3)

    # Slightly larger, non-multiple-of-128 batch: exercises the multi-block
    # "parallel" grid and the ragged (pad-free) last tile.
    N2 = 389
    x2 = jax.random.uniform(kx2, (N2, 1), jnp.float32, -3.14159, 3.14159)
    out2 = jax.block_until_ready(fwd(x2, params))
    assert out2.shape == (N2, 1)
    assert jnp.allclose(out2, ref_f32(x2), atol=1e-1, rtol=1e-1)

    print("KERNEL_OK")
</pallas_src>

<mosaic_0001>
module attributes {stable_mosaic.version = 11 : i64} {
  func.func @kernel(%arg0: i32, %arg1: memref<1x8xf32, #tpu.memory_space<vmem>>, %arg2: memref<64x1xf32, #tpu.memory_space<vmem>>, %arg3: memref<64x1xf32, #tpu.memory_space<vmem>>, %arg4: memref<64x64xbf16, #tpu.memory_space<vmem>>, %arg5: memref<64x1xf32, #tpu.memory_space<vmem>>, %arg6: memref<64x1xf32, #tpu.memory_space<vmem>>, %arg7: memref<1x1xf32, #tpu.memory_space<vmem>>, %arg8: memref<1x8xf32, #tpu.memory_space<vmem>>) attributes {dimension_semantics = [#tpu.dimension_semantics<parallel>], iteration_bounds = array<i64: 1>, scalar_prefetch = 0 : i64, scratch_operands = 0 : i64, tpu.core_type = #tpu.core_type<tc>, window_params = [{transform_indices = @transform_0, window_bounds = array<i64: 1, 8>}, {pipeline_mode = #tpu.pipeline_mode<synchronous>, transform_indices = @transform_1, window_bounds = array<i64: 64, 1>}, {pipeline_mode = #tpu.pipeline_mode<synchronous>, transform_indices = @transform_2, window_bounds = array<i64: 64, 1>}, {pipeline_mode = #tpu.pipeline_mode<synchronous>, transform_indices = @transform_3, window_bounds = array<i64: 64, 64>}, {pipeline_mode = #tpu.pipeline_mode<synchronous>, transform_indices = @transform_4, window_bounds = array<i64: 64, 1>}, {pipeline_mode = #tpu.pipeline_mode<synchronous>, transform_indices = @transform_5, window_bounds = array<i64: 64, 1>}, {pipeline_mode = #tpu.pipeline_mode<synchronous>, transform_indices = @transform_6, window_bounds = array<i64: 1, 1>}, {transform_indices = @transform_7, window_bounds = array<i64: 1, 8>}]} {
    %c0 = arith.constant 0 : index
    %c0_0 = arith.constant 0 : index
    %0 = vector.load %arg2[%c0, %c0_0] : memref<64x1xf32, #tpu.memory_space<vmem>>, vector<64x1xf32>
    %c0_1 = arith.constant 0 : index
    %c0_2 = arith.constant 0 : index
    %1 = vector.load %arg3[%c0_1, %c0_2] : memref<64x1xf32, #tpu.memory_space<vmem>>, vector<64x1xf32>
    %c0_3 = arith.constant 0 : index
    %c0_4 = arith.constant 0 : index
    %2 = vector.load %arg4[%c0_3, %c0_4] : memref<64x64xbf16, #tpu.memory_space<vmem>>, vector<64x64xbf16>
    %c0_5 = arith.constant 0 : index
    %c0_6 = arith.constant 0 : index
    %3 = vector.load %arg5[%c0_5, %c0_6] : memref<64x1xf32, #tpu.memory_space<vmem>>, vector<64x1xf32>
    %c0_7 = arith.constant 0 : index
    %c0_8 = arith.constant 0 : index
    %4 = vector.load %arg6[%c0_7, %c0_8] : memref<64x1xf32, #tpu.memory_space<vmem>>, vector<64x1xf32>
    %c0_9 = arith.constant 0 : index
    %c0_10 = arith.constant 0 : index
    %5 = vector.load %arg7[%c0_9, %c0_10] : memref<1x1xf32, #tpu.memory_space<vmem>>, vector<1x1xf32>
    %c0_11 = arith.constant 0 : index
    %c0_12 = arith.constant 0 : index
    %6 = vector.load %arg1[%c0_11, %c0_12] : memref<1x8xf32, #tpu.memory_space<vmem>>, vector<1x8xf32>
    %7 = vector.broadcast %0 : vector<64x1xf32> to vector<64x8xf32>
    %8 = vector.broadcast %6 : vector<1x8xf32> to vector<64x8xf32>
    %9 = arith.mulf %7, %8 : vector<64x8xf32>
    %10 = vector.broadcast %1 : vector<64x1xf32> to vector<64x8xf32>
    %11 = arith.addf %9, %10 : vector<64x8xf32>
    %cst = arith.constant 0.000000e+00 : f32
    %12 = vector.broadcast %cst : f32 to vector<64x8xf32>
    %13 = arith.maximumf %11, %12 : vector<64x8xf32>
    %14 = arith.truncf %13 : vector<64x8xf32> to vector<64x8xbf16>
    %cst_13 = arith.constant dense<0.000000e+00> : vector<64x8xf32>
    %15 = tpu.matmul %2, %14, %cst_13 {dimension_numbers = #tpu.dot_dimension_numbers<[1], [0], [0], [1], [0, 0, 1, 1], [], []>} : vector<64x64xbf16>, vector<64x8xbf16>, vector<64x8xf32> -> vector<64x8xf32>
    %16 = vector.broadcast %3 : vector<64x1xf32> to vector<64x8xf32>
    %17 = arith.addf %15, %16 : vector<64x8xf32>
    %cst_14 = arith.constant 0.000000e+00 : f32
    %18 = vector.broadcast %cst_14 : f32 to vector<64x8xf32>
    %19 = arith.maximumf %17, %18 : vector<64x8xf32>
    %20 = vector.broadcast %4 : vector<64x1xf32> to vector<64x8xf32>
    %21 = arith.mulf %20, %19 : vector<64x8xf32>
    %cst_15 = arith.constant dense<0.000000e+00> : vector<8xf32>
    %22 = vector.multi_reduction <add>, %21, %cst_15 [0] : vector<64x8xf32> to vector<8xf32>
    %23 = vector.shape_cast %22 : vector<8xf32> to vector<1x8xf32>
    %24 = vector.broadcast %5 : vector<1x1xf32> to vector<1x8xf32>
    %25 = arith.addf %23, %24 : vector<1x8xf32>
    %c0_16 = arith.constant 0 : index
    %c0_17 = arith.constant 0 : index
    %26 = vector.load %arg8[%c0_16, %c0_17] : memref<1x8xf32, #tpu.memory_space<vmem>>, vector<1x8xf32>
    tpu.vector_store %arg8[%c0_16, %c0_17], %25 {strides = array<i32>} : memref<1x8xf32, #tpu.memory_space<vmem>>, vector<1x8xf32>,
    return
  }
  func.func @transform_0(%arg0: i32) -> (i32, i32) {
    %c0_i32 = arith.constant 0 : i32
    %c0_i32_0 = arith.constant 0 : i32
    return %c0_i32, %arg0 : i32, i32
  }
  func.func @transform_1(%arg0: i32) -> (i32, i32) {
    %c0_i32 = arith.constant 0 : i32
    %c0_i32_0 = arith.constant 0 : i32
    %c0_i32_1 = arith.constant 0 : i32
    return %c0_i32, %c0_i32_0 : i32, i32
  }
  func.func @transform_2(%arg0: i32) -> (i32, i32) {
    %c0_i32 = arith.constant 0 : i32
    %c0_i32_0 = arith.constant 0 : i32
    %c0_i32_1 = arith.constant 0 : i32
    return %c0_i32, %c0_i32_0 : i32, i32
  }
  func.func @transform_3(%arg0: i32) -> (i32, i32) {
    %c0_i32 = arith.constant 0 : i32
    %c0_i32_0 = arith.constant 0 : i32
    %c0_i32_1 = arith.constant 0 : i32
    return %c0_i32, %c0_i32_0 : i32, i32
  }
  func.func @transform_4(%arg0: i32) -> (i32, i32) {
    %c0_i32 = arith.constant 0 : i32
    %c0_i32_0 = arith.constant 0 : i32
    %c0_i32_1 = arith.constant 0 : i32
    return %c0_i32, %c0_i32_0 : i32, i32
  }
  func.func @transform_5(%arg0: i32) -> (i32, i32) {
    %c0_i32 = arith.constant 0 : i32
    %c0_i32_0 = arith.constant 0 : i32
    %c0_i32_1 = arith.constant 0 : i32
    return %c0_i32, %c0_i32_0 : i32, i32
  }
  func.func @transform_6(%arg0: i32) -> (i32, i32) {
    %c0_i32 = arith.constant 0 : i32
    %c0_i32_0 = arith.constant 0 : i32
    %c0_i32_1 = arith.constant 0 : i32
    return %c0_i32, %c0_i32_0 : i32, i32
  }
  func.func @transform_7(%arg0: i32) -> (i32, i32) {
    %c0_i32 = arith.constant 0 : i32
    %c0_i32_0 = arith.constant 0 : i32
    return %c0_i32, %arg0 : i32, i32
  }
}

</mosaic_0001>

<llo_original>
// kernel: sine_model_forward.1
$region0: #{sine_model_forward.1}
  #allocation0 [shape = 'u32[]', space=smem, size = 0x4, offset = 0x4, fixed_abs, tag = 'smem constant byte address 0x4 - core index']
  #allocation1 [shape = 'u32[144,128]{1,0:T(1,128)}', space=vmem, size = 0x12000, scoped, tag = 'internal scratch']
  #allocation2 [shape = 'f32[1,1]{1,0:T(1,128)S(1)}', space=vmem, size = 0x200, scoped, tag = 'scoped memory for sine_model_forward.1']
  %s0 = inlined_call_operand.vmem [shape: f32[1,8], index: 0, kind: input, shape index: {}]
  %s1 = inlined_call_operand.vmem [shape: f32[64,1], index: 1, kind: input, shape index: {}]
  %s2 = inlined_call_operand.vmem [shape: f32[64,1], index: 2, kind: input, shape index: {}]
  %s3 = inlined_call_operand.vmem [shape: bf16[64,64], index: 3, kind: input, shape index: {}]
  %s4 = inlined_call_operand.vmem [shape: f32[64,1], index: 4, kind: input, shape index: {}]
  %s5 = inlined_call_operand.vmem [shape: f32[64,1], index: 5, kind: input, shape index: {}]
  %s6 = inlined_call_operand.<no memory space> [shape: f32[1,1], index: 6, kind: input, shape index: {}]
  %s7 = inlined_call_operand.hbm [shape: f32[1,8], index: 7, kind: output, shape index: {}]
  %s8 = sld [smem:[#allocation0]]
  $region38: #{sine_model_forward.1} parent=0
    _
  %s10 = ssub.s32 1, %s8
  %s11 = scalar_select 0, %s10, %s8
  %v12 = vstv %s6
  %13 = vst [vmem:[#allocation2] sm:$0x1] %v12
  $region1: #{sine_model_forward.1} parent=0
    #allocation3 [shape = 'u8[512]{0}', space=vmem, size = 0x400, scoped, tag = 'output window, operand 0, single buffered']
    #allocation4 [shape = 's32[1]{0}', space=sflag, size = 0x4, scoped, tag = 'scoped memory for sine_model_forward.1']
    %14 = vsyncpa [#allocation4], 0
    // Predicated region
    $region2: #{sine_model_forward.1} parent=1 // pred_check
      _
    $region3: #{sine_model_forward.1} parent=1 // pred_check_branch
      %16 = sbr.rel (0) target = $region5
    $region4: #{sine_model_forward.1} parent=1 // pred_region
      _
    $region5: #{sine_model_forward.1} parent=1 // pred_fallthru
      _
    // Predicated region
    $region6: #{sine_model_forward.1} parent=1 // pred_check
      _
    $region7: #{sine_model_forward.1} parent=1 // pred_check_branch
      %18 = sbr.rel (0) target = $region9
    $region8: #{sine_model_forward.1} parent=1 // pred_region
      _
    $region9: #{sine_model_forward.1} parent=1 // pred_fallthru
      _
    // Predicated region
    $region10: #{sine_model_forward.1} parent=1 // pred_check
      _
    $region11: #{sine_model_forward.1} parent=1 // pred_check_branch
      %20 = sbr.rel (0) target = $region13
    $region12: #{sine_model_forward.1} parent=1 // pred_region
      _
    $region13: #{sine_model_forward.1} parent=1 // pred_fallthru
      _
    // Predicated region
    $region14: #{sine_model_forward.1} parent=1 // pred_check
      _
    $region15: #{sine_model_forward.1} parent=1 // pred_check_branch
      %22 = sbr.rel (0) target = $region17
    $region16: #{sine_model_forward.1} parent=1 // pred_region
      _
    $region17: #{sine_model_forward.1} parent=1 // pred_fallthru
      _
    // Predicated region
    $region18: #{sine_model_forward.1} parent=1 // pred_check
      _
    $region19: #{sine_model_forward.1} parent=1 // pred_check_branch
      %24 = sbr.rel (0) target = $region21
    $region20: #{sine_model_forward.1} parent=1 // pred_region
      _
    $region21: #{sine_model_forward.1} parent=1 // pred_fallthru
      _
    // Predicated region
    $region22: #{sine_model_forward.1} parent=1 // pred_check
      _
    $region23: #{sine_model_forward.1} parent=1 // pred_check_branch
      %26 = sbr.rel (0) target = $region25
    $region24: #{sine_model_forward.1} parent=1 // pred_region
      _
    $region25: #{sine_model_forward.1} parent=1 // pred_fallthru
      _
    // Predicated region
    $region26: #{sine_model_forward.1} parent=1 // pred_check
      _
    $region27: #{sine_model_forward.1} parent=1 // pred_check_branch
      %28 = sbr.rel (0) target = $region29
    $region28: #{sine_model_forward.1} parent=1 // pred_region
      _
    $region29: #{sine_model_forward.1} parent=1 // pred_fallthru
      _
    %v30 = vld [vmem:[%s1] sm:$0xff]
    %v31 = vld [vmem:[%s1 + $0x8] sm:$0xff]
    %v32 = vld [vmem:[%s1 + $0x10] sm:$0xff]
    %v33 = vld [vmem:[%s1 + $0x18] sm:$0xff]
    %v34 = vld [vmem:[%s1 + $0x20] sm:$0xff]
    %v35 = vld [vmem:[%s1 + $0x28] sm:$0xff]
    %v36 = vld [vmem:[%s1 + $0x30] sm:$0xff]
    %v37 = vld [vmem:[%s1 + $0x38] sm:$0xff]
    %v38 = vld [vmem:[%s2] sm:$0xff]
    %v39 = vld [vmem:[%s2 + $0x8] sm:$0xff]
    %v40 = vld [vmem:[%s2 + $0x10] sm:$0xff]
    %v41 = vld [vmem:[%s2 + $0x18] sm:$0xff]
    %v42 = vld [vmem:[%s2 + $0x20] sm:$0xff]
    %v43 = vld [vmem:[%s2 + $0x28] sm:$0xff]
    %v44 = vld [vmem:[%s2 + $0x30] sm:$0xff]
    %v45 = vld [vmem:[%s2 + $0x38] sm:$0xff]
    %v46 = vld [vmem:[%s3] sm:$0xf]
    %v47 = vld [vmem:[%s3 + $0x4] sm:$0xf]
    %v48 = vld [vmem:[%s3 + $0x8] sm:$0xf]
    %v49 = vld [vmem:[%s3 + $0xc] sm:$0xf]
    %v50 = vld [vmem:[%s3 + $0x10] sm:$0xf]
    %v51 = vld [vmem:[%s3 + $0x14] sm:$0xf]
    %v52 = vld [vmem:[%s3 + $0x18] sm:$0xf]
    %v53 = vld [vmem:[%s3 + $0x1c] sm:$0xf]
    %v54 = vld [vmem:[%s4] sm:$0xff]
    %v55 = vld [vmem:[%s4 + $0x8] sm:$0xff]
    %v56 = vld [vmem:[%s4 + $0x10] sm:$0xff]
    %v57 = vld [vmem:[%s4 + $0x18] sm:$0xff]
    %v58 = vld [vmem:[%s4 + $0x20] sm:$0xff]
    %v59 = vld [vmem:[%s4 + $0x28] sm:$0xff]
    %v60 = vld [vmem:[%s4 + $0x30] sm:$0xff]
    %v61 = vld [vmem:[%s4 + $0x38] sm:$0xff]
    %v62 = vld [vmem:[%s5] sm:$0xff]
    %v63 = vld [vmem:[%s5 + $0x8] sm:$0xff]
    %v64 = vld [vmem:[%s5 + $0x10] sm:$0xff]
    %v65 = vld [vmem:[%s5 + $0x18] sm:$0xff]
    %v66 = vld [vmem:[%s5 + $0x20] sm:$0xff]
    %v67 = vld [vmem:[%s5 + $0x28] sm:$0xff]
    %v68 = vld [vmem:[%s5 + $0x30] sm:$0xff]
    %v69 = vld [vmem:[%s5 + $0x38] sm:$0xff]
    %v70 = vld [vmem:[#allocation2] sm:$0x1]
    %v71 = vld [vmem:[%s0] sm:$0x1]
    %73 = vset.pattern.permute.xlu0 0
    %74 = vperm.xlu0 %73, %v30
    %v75 = vpop.permute.xlu0 %74
    %78 = vset.pattern.permute.xlu0 0
    %79 = vperm.xlu0 %78, %v31
    %v80 = vpop.permute.xlu0 %79
    %83 = vset.pattern.permute.xlu0 0
    %84 = vperm.xlu0 %83, %v32
    %v85 = vpop.permute.xlu0 %84
    %88 = vset.pattern.permute.xlu0 0
    %89 = vperm.xlu0 %88, %v33
    %v90 = vpop.permute.xlu0 %89
    %93 = vset.pattern.permute.xlu0 0
    %94 = vperm.xlu0 %93, %v34
    %v95 = vpop.permute.xlu0 %94
    %98 = vset.pattern.permute.xlu0 0
    %99 = vperm.xlu0 %98, %v35
    %v100 = vpop.permute.xlu0 %99
    %103 = vset.pattern.permute.xlu0 0
    %104 = vperm.xlu0 %103, %v36
    %v105 = vpop.permute.xlu0 %104
    %108 = vset.pattern.permute.xlu0 0
    %109 = vperm.xlu0 %108, %v37
    %v110 = vpop.permute.xlu0 %109
    %v113 = vlaneseq
    %v114 = vshrl.u32 %v113, 7
    %v115 = vsub.s32 0, %v114
    %v116 = vrot.slane %v71, %v115
    %v118 = vmul.f32 %v75, %v116
    %v119 = vmul.f32 %v80, %v116
    %v120 = vmul.f32 %v85, %v116
    %v121 = vmul.f32 %v90, %v116
    %v122 = vmul.f32 %v95, %v116
    %v123 = vmul.f32 %v100, %v116
    %v124 = vmul.f32 %v105, %v116
    %v125 = vmul.f32 %v110, %v116
    %127 = vset.pattern.permute.xlu0 0
    %128 = vperm.xlu0 %127, %v38
    %v129 = vpop.permute.xlu0 %128
    %132 = vset.pattern.permute.xlu0 0
    %133 = vperm.xlu0 %132, %v39
    %v134 = vpop.permute.xlu0 %133
    %137 = vset.pattern.permute.xlu0 0
    %138 = vperm.xlu0 %137, %v40
    %v139 = vpop.permute.xlu0 %138
    %142 = vset.pattern.permute.xlu0 0
    %143 = vperm.xlu0 %142, %v41
    %v144 = vpop.permute.xlu0 %143
    %147 = vset.pattern.permute.xlu0 0
    %148 = vperm.xlu0 %147, %v42
    %v149 = vpop.permute.xlu0 %148
    %152 = vset.pattern.permute.xlu0 0
    %153 = vperm.xlu0 %152, %v43
    %v154 = vpop.permute.xlu0 %153
    %157 = vset.pattern.permute.xlu0 0
    %158 = vperm.xlu0 %157, %v44
    %v159 = vpop.permute.xlu0 %158
    %162 = vset.pattern.permute.xlu0 0
    %163 = vperm.xlu0 %162, %v45
    %v164 = vpop.permute.xlu0 %163
    %v166 = vadd.f32 %v118, %v129
    %v167 = vadd.f32 %v119, %v134
    %v168 = vadd.f32 %v120, %v139
    %v169 = vadd.f32 %v121, %v144
    %v170 = vadd.f32 %v122, %v149
    %v171 = vadd.f32 %v123, %v154
    %v172 = vadd.f32 %v124, %v159
    %v173 = vadd.f32 %v125, %v164
    %v174 = vmax.f32 %v166, 0.0
    %v175 = vmax.f32 %v167, 0.0
    %v176 = vmax.f32 %v168, 0.0
    %v177 = vmax.f32 %v169, 0.0
    %v178 = vmax.f32 %v170, 0.0
    %v179 = vmax.f32 %v171, 0.0
    %v180 = vmax.f32 %v172, 0.0
    %v181 = vmax.f32 %v173, 0.0
    %v182 = vpack.c.bf16 %v175, %v174
    %v183 = vpack.c.bf16 %v177, %v176
    %v184 = vpack.c.bf16 %v179, %v178
    %v185 = vpack.c.bf16 %v181, %v180
    %187 = vset.pattern.permute.xlu0 0
    %188 = vperm.xlu0 %187, %v54
    %v189 = vpop.permute.xlu0 %188
    %192 = vset.pattern.permute.xlu0 0
    %193 = vperm.xlu0 %192, %v55
    %v194 = vpop.permute.xlu0 %193
    %197 = vset.pattern.permute.xlu0 0
    %198 = vperm.xlu0 %197, %v56
    %v199 = vpop.permute.xlu0 %198
    %202 = vset.pattern.permute.xlu0 0
    %203 = vperm.xlu0 %202, %v57
    %v204 = vpop.permute.xlu0 %203
    %207 = vset.pattern.permute.xlu0 0
    %208 = vperm.xlu0 %207, %v58
    %v209 = vpop.permute.xlu0 %208
    %212 = vset.pattern.permute.xlu0 0
    %213 = vperm.xlu0 %212, %v59
    %v214 = vpop.permute.xlu0 %213
    %217 = vset.pattern.permute.xlu0 0
    %218 = vperm.xlu0 %217, %v60
    %v219 = vpop.permute.xlu0 %218
    %222 = vset.pattern.permute.xlu0 0
    %223 = vperm.xlu0 %222, %v61
    %v224 = vpop.permute.xlu0 %223
    %v234 = vunpack.c.l.b16 %v46
    %v235 = vunpack.c.l.b16 %v47
    %v236 = vunpack.c.l.b16 %v48
    %v237 = vunpack.c.l.b16 %v49
    %v238 = vunpack.c.l.b16 %v50
    %v239 = vunpack.c.l.b16 %v51
    %v240 = vunpack.c.l.b16 %v52
    %v241 = vunpack.c.l.b16 %v53
    %v242 = vpack.c.b16 %v235, %v234
    %v243 = vpack.c.b16 %v237, %v236
    %v244 = vpack.c.b16 %v239, %v238
    %v245 = vpack.c.b16 %v241, %v240
    %vm246 = vcmask 523264
    %v248 = vsel %vm246, %v242, 0
    %v251 = vsel %vm246, %v243, 0
    %v254 = vsel %vm246, %v244, 0
    %v257 = vsel %vm246, %v245, 0
    %259 = vmatprep.subr.bf16.mxu0 0
    %260 = vmatpush1.bf16.msra.mxu0 0
    %261 = vmatprep.subr.bf16.mxu0 0
    %262 = vmatpush1.bf16.msra.mxu0 0
    %263 = vmatprep.subr.bf16.mxu0 0
    %264 = vmatpush1.bf16.msra.mxu0 0
    %265 = vmatprep.subr.bf16.mxu0 0
    %266 = vmatpush1.bf16.msra.mxu0 0
    %267 = vmatprep.subr.bf16.mxu0 0
    %268 = vmatpush1.bf16.msra.mxu0 %v185
    %269 = vmatprep.subr.bf16.mxu0 0
    %270 = vmatpush1.bf16.msra.mxu0 %v184
    %271 = vmatprep.subr.bf16.mxu0 0
    %272 = vmatpush1.bf16.msra.mxu0 %v183
    %273 = vmatprep.subr.bf16.mxu0 0
    %274 = vmatpush1.bf16.msra.mxu0 %v182
    %275 = vmatprep.subr.bf16.mxu0 0
    %276 = vmatpush2.bf16.msra.mxu0 0
    %277 = vmatprep.subr.bf16.mxu0 0
    %278 = vmatpush2.bf16.msra.mxu0 0
    %279 = vmatprep.subr.bf16.mxu0 0
    %280 = vmatpush2.bf16.msra.mxu0 0
    %281 = vmatprep.subr.bf16.mxu0 0
    %282 = vmatpush2.bf16.msra.mxu0 0
    %283 = vmatprep.subr.bf16.mxu0 0
    %284 = vmatpush2.bf16.msra.mxu0 0
    %285 = vmatprep.subr.bf16.mxu0 0
    %286 = vmatpush2.bf16.msra.mxu0 0
    %287 = vmatprep.subr.bf16.mxu0 0
    %288 = vmatpush2.bf16.msra.mxu0 0
    %289 = vmatprep.subr.bf16.mxu0 0
    %290 = vmatpush2.bf16.msra.mxu0 0
    %291 = vmatprep.mubr.bf16.mxu0 0
    %292 = vmatmul.mubr.bf16.gmra.mxu0 %v248
    %v293 = vpop.f32.mrf.mxu0
    %v294 = vadd.f32 %v189, %v293
    %v295 = vpop.f32.mrf.mxu0
    %v296 = vpop.f32.mrf.mxu0
    %v297 = vadd.f32 %v194, %v296
    %v298 = vpop.f32.mrf.mxu0
    %299 = vmatprep.mubr.bf16.mxu0 0
    %300 = vmatmul.mubr.bf16.gmra.mxu0 %v251
    %v301 = vpop.f32.mrf.mxu0
    %v302 = vadd.f32 %v199, %v301
    %v303 = vpop.f32.mrf.mxu0
    %v304 = vpop.f32.mrf.mxu0
    %v305 = vadd.f32 %v204, %v304
    %v306 = vpop.f32.mrf.mxu0
    %307 = vmatprep.mubr.bf16.mxu0 0
    %308 = vmatmul.mubr.bf16.gmra.mxu0 %v254
    %v309 = vpop.f32.mrf.mxu0
    %v310 = vadd.f32 %v209, %v309
    %v311 = vpop.f32.mrf.mxu0
    %v312 = vpop.f32.mrf.mxu0
    %v313 = vadd.f32 %v214, %v312
    %v314 = vpop.f32.mrf.mxu0
    %315 = vmatprep.mubr.bf16.mxu0 0
    %316 = vmatmul.mubr.bf16.gmra.mxu0 %v257
    %v317 = vpop.f32.mrf.mxu0
    %v318 = vadd.f32 %v219, %v317
    %v319 = vpop.f32.mrf.mxu0
    %v320 = vpop.f32.mrf.mxu0
    %v321 = vadd.f32 %v224, %v320
    %v322 = vpop.f32.mrf.mxu0
    %323 = vdwg.mxu0
    %v324 = vmax.f32 %v294, 0.0
    %v325 = vmax.f32 %v297, 0.0
    %v326 = vmax.f32 %v302, 0.0
    %v327 = vmax.f32 %v305, 0.0
    %v328 = vmax.f32 %v310, 0.0
    %v329 = vmax.f32 %v313, 0.0
    %v330 = vmax.f32 %v318, 0.0
    %v331 = vmax.f32 %v321, 0.0
    %333 = vset.pattern.permute.xlu0 0
    %334 = vperm.xlu0 %333, %v62
    %v335 = vpop.permute.xlu0 %334
    %338 = vset.pattern.permute.xlu0 0
    %339 = vperm.xlu0 %338, %v63
    %v340 = vpop.permute.xlu0 %339
    %343 = vset.pattern.permute.xlu0 0
    %344 = vperm.xlu0 %343, %v64
    %v345 = vpop.permute.xlu0 %344
    %348 = vset.pattern.permute.xlu0 0
    %349 = vperm.xlu0 %348, %v65
    %v350 = vpop.permute.xlu0 %349
    %353 = vset.pattern.permute.xlu0 0
    %354 = vperm.xlu0 %353, %v66
    %v355 = vpop.permute.xlu0 %354
    %358 = vset.pattern.permute.xlu0 0
    %359 = vperm.xlu0 %358, %v67
    %v360 = vpop.permute.xlu0 %359
    %363 = vset.pattern.permute.xlu0 0
    %364 = vperm.xlu0 %363, %v68
    %v365 = vpop.permute.xlu0 %364
    %368 = vset.pattern.permute.xlu0 0
    %369 = vperm.xlu0 %368, %v69
    %v370 = vpop.permute.xlu0 %369
    %v372 = vmul.f32 %v335, %v324
    %v373 = vmul.f32 %v340, %v325
    %v374 = vmul.f32 %v345, %v326
    %v375 = vmul.f32 %v350, %v327
    %v376 = vmul.f32 %v355, %v328
    %v377 = vmul.f32 %v360, %v329
    %v378 = vmul.f32 %v365, %v330
    %v379 = vmul.f32 %v370, %v331
    %vm380 = vcmask 64512
    %v381 = vsel %vm380, %v372, 0.0
    %v382 = vsel %vm380, %v373, 0.0
    %v383 = vadd.f32 %v381, %v382
    %v384 = vsel %vm380, %v374, 0.0
    %v385 = vadd.f32 %v383, %v384
    %v386 = vsel %vm380, %v375, 0.0
    %v387 = vadd.f32 %v385, %v386
    %v388 = vsel %vm380, %v376, 0.0
    %v389 = vadd.f32 %v387, %v388
    %v390 = vsel %vm380, %v377, 0.0
    %v391 = vadd.f32 %v389, %v390
    %v392 = vsel %vm380, %v378, 0.0
    %v393 = vadd.f32 %v391, %v392
    %v394 = vsel %vm380, %v379, 0.0
    %v395 = vadd.f32 %v393, %v394
    %v396 = vrot.slane %v395, 4
    %v397 = vadd.f32 %v395, %v396
    %v398 = vrot.slane %v397, 2
    %v399 = vadd.f32 %v397, %v398
    %v400 = vrot.slane %v399, 1
    %v401 = vadd.f32 %v399, %v400
    %403 = vset.pattern.permute.xlu0 0
    %404 = vperm.xlu0 %403, %v70
    %v405 = vpop.permute.xlu0 %404
    %v407 = vlaneseq
    %v408 = vshrl.u32 %v407, 7
    %v409 = vsub.s32 0, %v408
    %v410 = vrot.slane %v405, %v409
    %v411 = vadd.f32 %v401, %v410
    %vm412 = vcmask 57344
    %413 = vst.msk [vmem:[#allocation3] sm:$0x1] %vm412, %v411
    // Predicated region
    $region30: #{sine_model_forward.1} parent=1 // pred_check
      _
    $region31: #{sine_model_forward.1} parent=1 // pred_check_branch
      %415 = sbr.rel (0) target = $region33
    $region32: #{sine_model_forward.1} parent=1 // pred_region
      %s417 = ssub.s32 16, 16
      %418 = vsyncadd [#allocation4], %s417
      %s420 = sshll.u32 [#allocation3], 4
      %s421 = int_to_ptr.vmem [resolvable:$true] %s420
      %423 = dma.vmem_to_hbm [thread:$0]  %s421, 16, %s7, [#allocation4]
    $region33: #{sine_model_forward.1} parent=1 // pred_fallthru
      _
    // Predicated region
    $region34: #{sine_model_forward.1} parent=1 // pred_check
      _
    $region35: #{sine_model_forward.1} parent=1 // pred_check_branch
      %425 = sbr.rel (0) target = $region37
    $region36: #{sine_model_forward.1} parent=1 // pred_region
      %426 = dma.done [#allocation4], 16
    $region37: #{sine_model_forward.1} parent=1 // pred_fallthru
      _
    %427 = vsyncpa [#allocation4], 1

</llo_original>
